<compile_context>
chip_gen: v5e
topology: v5e:2x2
jax: 0.10.0
libtpu: 0.0.40
codegen_flags: <defaults>
</compile_context>

<pallas_src>
import jax
import jax.numpy as jnp
from jax.experimental import pallas as pl
from jax.experimental.pallas import tpu as pltpu

STATE_DIM = 32
HIDDEN = 64
N_ACTIONS = 8
LANES = 128          # lane-dense padding width
NEG_PAD = -1e30      # bias padding for non-existent actions (never wins argmax)


def dqn_act_kernel(eps_u_ref, rand_a_ref, state_ref, w1_ref, w2_ref, b2_ref,
                   action_ref, value_ref):
    """Value-net forward + epsilon-greedy selection, batch = 1.

    eps_u_ref : (2,)            f32 SMEM   [epsilon, u~U(0,1)]
    rand_a_ref: (1,)            i32 SMEM   pre-drawn random action
    state_ref : (1, 128)        f32 VMEM   [state(32) | 1.0 bias lane | zeros]
    w1_ref    : (HIDDEN, 128)   f32 VMEM   [W1(64x32) | b1 column | zeros]
    w2_ref    : (HIDDEN, 128)   f32 VMEM   [W2^T(64x8) | zeros]
    b2_ref    : (1, 128)        f32 VMEM   [b2(8) | -1e30 padding]
    action_ref: (1,)            i32 SMEM   selected action
    value_ref : (1,)            f32 SMEM   Q-value of the selected action
    """
    s = state_ref[...]                                                # (1, 128)

    # Layer 1 + ReLU:  h[j] = relu(sum_k W1[j,k]*s[k] + b1[j])  (VPU mul + lane reduce)
    h = jnp.sum(w1_ref[...] * s, axis=1, keepdims=True)               # (HIDDEN, 1)
    h = jnp.maximum(h, 0.0)

    # Layer 2:  q[a] = sum_j h[j]*W2[a,j] + b2[a]   (VPU mul + sublane reduce, lane-dense q)
    q = jnp.sum(h * w2_ref[...], axis=0, keepdims=True) + b2_ref[...]  # (1, 128)

    # Greedy selection: first maximal index (matches torch.argmax tie-break).
    q_max = jnp.max(q)
    col = jax.lax.broadcasted_iota(jnp.int32, q.shape, 1)
    greedy = jnp.min(jnp.where(q == q_max, col, jnp.int32(2 ** 30)))

    # Epsilon-greedy select, all on device:  explore iff u < epsilon.
    explore = eps_u_ref[1] < eps_u_ref[0]
    action = jnp.where(explore, rand_a_ref[0], greedy)

    action_ref[0] = action
    value_ref[0] = jnp.sum(jnp.where(col == action, q, 0.0))


@jax.jit
def _dqn_forward_device(state, epsilon, key, w1_p, w2_p, b2_p):
    # Lane-dense state with a fused bias lane (cheap XLA pad, fused, no extra sync).
    state_p = jnp.zeros((1, LANES), jnp.float32)
    state_p = state_p.at[0, :STATE_DIM].set(state[0].astype(jnp.float32))
    state_p = state_p.at[0, STATE_DIM].set(1.0)

    # On-device randomness for the epsilon branch (no host round trips).
    k_eps, k_act = jax.random.split(key)
    u = jax.random.uniform(k_eps, (), jnp.float32)
    eps_u = jnp.stack([jnp.asarray(epsilon, jnp.float32), u])
    rand_a = jax.random.randint(k_act, (1,), 0, N_ACTIONS, dtype=jnp.int32)

    action, value = pl.pallas_call(
        dqn_act_kernel,
        out_shape=(
            jax.ShapeDtypeStruct((1,), jnp.int32),    # selected action
            jax.ShapeDtypeStruct((1,), jnp.float32),  # its Q-value
        ),
        in_specs=[
            pl.BlockSpec(memory_space=pltpu.MemorySpace.SMEM),  # eps/u scalars
            pl.BlockSpec(memory_space=pltpu.MemorySpace.SMEM),  # random action
            pl.BlockSpec(memory_space=pltpu.MemorySpace.VMEM),  # state (1,128)
            pl.BlockSpec(memory_space=pltpu.MemorySpace.VMEM),  # W1 packed
            pl.BlockSpec(memory_space=pltpu.MemorySpace.VMEM),  # W2 packed
            pl.BlockSpec(memory_space=pltpu.MemorySpace.VMEM),  # b2 packed
        ],
        out_specs=(
            pl.BlockSpec(memory_space=pltpu.MemorySpace.SMEM),
            pl.BlockSpec(memory_space=pltpu.MemorySpace.SMEM),
        ),
    )(eps_u, rand_a, state_p, w1_p, w2_p, b2_p)
    return action[0], value[0]


class DqnPallas:
    """JAX/Pallas counterpart of Dqn.forward (inference / action selection)."""

    def __init__(self, params, key=None):
        # params are in torch.nn.Linear layout:
        #   w1 (HIDDEN, STATE_DIM), b1 (HIDDEN,), w2 (N_ACTIONS, HIDDEN), b2 (N_ACTIONS,)
        w1, b1, w2, b2 = (jnp.asarray(p, jnp.float32) for p in params)
        # Pack once into lane-dense, layout-friendly tiles (unmasked loads in-kernel).
        w1_p = jnp.zeros((HIDDEN, LANES), jnp.float32)
        w1_p = w1_p.at[:, :STATE_DIM].set(w1).at[:, STATE_DIM].set(b1)  # bias folded in
        w2_p = jnp.zeros((HIDDEN, LANES), jnp.float32).at[:, :N_ACTIONS].set(w2.T)
        b2_p = jnp.full((1, LANES), NEG_PAD, jnp.float32).at[0, :N_ACTIONS].set(b2)
        self._packed = (w1_p, w2_p, b2_p)
        self._key = key if key is not None else jax.random.PRNGKey(0)

    def forward(self, state, epsilon=0.0, key=None):
        state = jnp.asarray(state, jnp.float32)
        if state.ndim != 2 or state.shape[0] != 1:
            raise ValueError('Batch size of the given state tensor must be 1!')
        if key is None:
            self._key, key = jax.random.split(self._key)
        action_dev, value_dev = _dqn_forward_device(
            state, float(epsilon), key, *self._packed)
        # Single device->host transfer (the `.item()` pair the spec returns).
        a, v = jax.device_get((action_dev, value_dev))
        return int(a), float(v)

    __call__ = forward

    # TODO(synk): td_loss / update / replay buffer are training-loop machinery
    # (optimizer state, gather over replay batches) and are out of scope here.


def init_params(key):
    """torch.nn.Linear default init (uniform +-1/sqrt(fan_in)), torch layout."""
    k1, k2, k3, k4 = jax.random.split(key, 4)
    s1 = 1.0 / (STATE_DIM ** 0.5)
    s2 = 1.0 / (HIDDEN ** 0.5)
    w1 = jax.random.uniform(k1, (HIDDEN, STATE_DIM), jnp.float32, -s1, s1)
    b1 = jax.random.uniform(k2, (HIDDEN,), jnp.float32, -s1, s1)
    w2 = jax.random.uniform(k3, (N_ACTIONS, HIDDEN), jnp.float32, -s2, s2)
    b2 = jax.random.uniform(k4, (N_ACTIONS,), jnp.float32, -s2, s2)
    return w1, b1, w2, b2


if __name__ == "__main__":
    root = jax.random.PRNGKey(0)
    k_param, k_state, k_greedy, k_explore = jax.random.split(root, 4)

    params = init_params(k_param)
    state = jax.random.normal(k_state, (1, STATE_DIM), jnp.float32)

    dqn = DqnPallas(params)

    # Run the kernel once on device and block on the result.
    dev_out = _dqn_forward_device(state, 0.0, k_greedy, *dqn._packed)
    jax.block_until_ready(dev_out)

    # Greedy path (epsilon = 0.0, same as torch default).
    action, value = dqn.forward(state, epsilon=0.0, key=k_greedy)

    # Pure-JAX reference of the same network (torch-layout weights).
    w1, b1, w2, b2 = params
    ref_q = jnp.squeeze(jnp.maximum(state @ w1.T + b1, 0.0) @ w2.T + b2)
    ref_action = int(jnp.argmax(ref_q))
    ref_value = float(ref_q[ref_action])
    assert action == ref_action, (action, ref_action)
    assert abs(value - ref_value) <= 1e-4 * max(1.0, abs(ref_value)), (value, ref_value)

    # Exploration path (epsilon = 1.0 -> always random; value must equal Q[action]).
    a2, v2 = dqn.forward(state, epsilon=1.0, key=k_explore)
    assert 0 <= a2 < N_ACTIONS, a2
    rv2 = float(ref_q[a2])
    assert abs(v2 - rv2) <= 1e-4 * max(1.0, abs(rv2)), (v2, rv2)

    print("KERNEL_OK")
</pallas_src>

<mosaic_0001>
module attributes {stable_mosaic.version = 11 : i64} {
  func.func @dqn_act_kernel(%arg0: memref<2xf32, #tpu.memory_space<smem>>, %arg1: memref<1xi32, #tpu.memory_space<smem>>, %arg2: memref<1x128xf32, #tpu.memory_space<vmem>>, %arg3: memref<64x128xf32, #tpu.memory_space<vmem>>, %arg4: memref<64x128xf32, #tpu.memory_space<vmem>>, %arg5: memref<1x128xf32, #tpu.memory_space<vmem>>, %arg6: memref<1xi32, #tpu.memory_space<smem>>, %arg7: memref<1xf32, #tpu.memory_space<smem>>) attributes {dimension_semantics = [], scalar_prefetch = 0 : i64, scratch_operands = 0 : i64, tpu.core_type = #tpu.core_type<tc>} {
    %c0 = arith.constant 0 : index
    %c0_0 = arith.constant 0 : index
    %0 = vector.load %arg2[%c0, %c0_0] : memref<1x128xf32, #tpu.memory_space<vmem>>, vector<1x128xf32>
    %c0_1 = arith.constant 0 : index
    %c0_2 = arith.constant 0 : index
    %1 = vector.load %arg3[%c0_1, %c0_2] : memref<64x128xf32, #tpu.memory_space<vmem>>, vector<64x128xf32>
    %2 = vector.broadcast %0 : vector<1x128xf32> to vector<64x128xf32>
    %3 = arith.mulf %1, %2 : vector<64x128xf32>
    %cst = arith.constant dense<0.000000e+00> : vector<64xf32>
    %4 = vector.multi_reduction <add>, %3, %cst [1] : vector<64x128xf32> to vector<64xf32>
    %5 = vector.shape_cast %4 : vector<64xf32> to vector<64x1xf32>
    %cst_3 = arith.constant 0.000000e+00 : f32
    %6 = vector.broadcast %cst_3 : f32 to vector<64x1xf32>
    %7 = arith.maximumf %5, %6 : vector<64x1xf32>
    %c0_4 = arith.constant 0 : index
    %c0_5 = arith.constant 0 : index
    %8 = vector.load %arg4[%c0_4, %c0_5] : memref<64x128xf32, #tpu.memory_space<vmem>>, vector<64x128xf32>
    %9 = vector.broadcast %7 : vector<64x1xf32> to vector<64x128xf32>
    %10 = arith.mulf %9, %8 : vector<64x128xf32>
    %cst_6 = arith.constant dense<0.000000e+00> : vector<128xf32>
    %11 = vector.multi_reduction <add>, %10, %cst_6 [0] : vector<64x128xf32> to vector<128xf32>
    %12 = vector.shape_cast %11 : vector<128xf32> to vector<1x128xf32>
    %c0_7 = arith.constant 0 : index
    %c0_8 = arith.constant 0 : index
    %13 = vector.load %arg5[%c0_7, %c0_8] : memref<1x128xf32, #tpu.memory_space<vmem>>, vector<1x128xf32>
    %14 = arith.addf %12, %13 : vector<1x128xf32>
    %15 = vector.shape_cast %14 : vector<1x128xf32> to vector<1x1x128xf32>
    %cst_9 = arith.constant dense<0xFF800000> : vector<1xf32>
    %16 = vector.multi_reduction <maximumf>, %15, %cst_9 [1, 2] : vector<1x1x128xf32> to vector<1xf32>
    %17 = vector.shape_cast %16 : vector<1xf32> to vector<1x1x1xf32>
    %18 = vector.extract %17[0, 0, 0] : f32 from vector<1x1x1xf32>
    %19 = tpu.iota {dimensions = array<i32: 1>} : vector<1x128xi32>
    %20 = vector.broadcast %18 : f32 to vector<1x128xf32>
    %21 = arith.cmpf oeq, %14, %20 : vector<1x128xf32>
    %c1073741824_i32 = arith.constant 1073741824 : i32
    %22 = vector.broadcast %c1073741824_i32 : i32 to vector<1x128xi32>
    %23 = arith.select %21, %19, %22 : vector<1x128xi1>, vector<1x128xi32>
    %24 = vector.shape_cast %23 : vector<1x128xi32> to vector<1x1x128xi32>
    %cst_10 = arith.constant dense<2147483647> : vector<1xi32>
    %25 = vector.multi_reduction <minsi>, %24, %cst_10 [1, 2] : vector<1x1x128xi32> to vector<1xi32>
    %26 = vector.shape_cast %25 : vector<1xi32> to vector<1x1x1xi32>
    %27 = vector.extract %26[0, 0, 0] : i32 from vector<1x1x1xi32>
    %c1 = arith.constant 1 : index
    %28 = memref.load %arg0[%c1] : memref<2xf32, #tpu.memory_space<smem>>
    %c0_11 = arith.constant 0 : index
    %29 = memref.load %arg0[%c0_11] : memref<2xf32, #tpu.memory_space<smem>>
    %30 = arith.cmpf olt, %28, %29 : f32
    %c0_12 = arith.constant 0 : index
    %31 = memref.load %arg1[%c0_12] : memref<1xi32, #tpu.memory_space<smem>>
    %32 = arith.select %30, %31, %27 : i32
    %c0_13 = arith.constant 0 : index
    %33 = memref.load %arg6[%c0_13] : memref<1xi32, #tpu.memory_space<smem>>
    memref.store %32, %arg6[%c0_13] : memref<1xi32, #tpu.memory_space<smem>>
    %34 = vector.broadcast %32 : i32 to vector<1x128xi32>
    %35 = arith.cmpi eq, %19, %34 : vector<1x128xi32>
    %cst_14 = arith.constant 0.000000e+00 : f32
    %36 = vector.broadcast %cst_14 : f32 to vector<1x128xf32>
    %37 = arith.select %35, %14, %36 : vector<1x128xi1>, vector<1x128xf32>
    %38 = vector.shape_cast %37 : vector<1x128xf32> to vector<1x1x128xf32>
    %cst_15 = arith.constant dense<0.000000e+00> : vector<1xf32>
    %39 = vector.multi_reduction <add>, %38, %cst_15 [1, 2] : vector<1x1x128xf32> to vector<1xf32>
    %40 = vector.shape_cast %39 : vector<1xf32> to vector<1x1x1xf32>
    %41 = vector.extract %40[0, 0, 0] : f32 from vector<1x1x1xf32>
    %c0_16 = arith.constant 0 : index
    %42 = memref.load %arg7[%c0_16] : memref<1xf32, #tpu.memory_space<smem>>
    memref.store %41, %arg7[%c0_16] : memref<1xf32, #tpu.memory_space<smem>>
    return
  }
}

</mosaic_0001>

<llo_original>
// kernel: _dqn_forward_device.1
$region0: #{_dqn_forward_device.1}
  #allocation0 [shape = 'u32[]', space=smem, size = 0x4, offset = 0x4, fixed_abs, tag = 'smem constant byte address 0x4 - core index']
  #allocation1 [shape = 'u32[72,128]{1,0:T(1,128)}', space=vmem, size = 0x9000, scoped, tag = 'internal scratch']
  #allocation2 [shape = 's32[1]{0:T(128)S(6)}', space=smem, size = 0x200, scoped, tag = 'scoped memory for _dqn_forward_device.1']
  %s0 = inlined_call_operand.vmem [shape: f32[2], index: 0, kind: input, shape index: {}]
  %s1 = inlined_call_operand.<no memory space> [shape: s32[1], index: 1, kind: input, shape index: {}]
  %s2 = inlined_call_operand.vmem [shape: f32[1,128], index: 2, kind: input, shape index: {}]
  %s3 = inlined_call_operand.vmem [shape: f32[64,128], index: 3, kind: input, shape index: {}]
  %s4 = inlined_call_operand.vmem [shape: f32[64,128], index: 4, kind: input, shape index: {}]
  %s5 = inlined_call_operand.vmem [shape: f32[1,128], index: 5, kind: input, shape index: {}]
  %s6 = inlined_call_operand.hbm [shape: s32[1], index: 6, kind: output, shape index: {0}]
  %s7 = inlined_call_operand.hbm [shape: f32[1], index: 7, kind: output, shape index: {1}]
  %8 = xla_tuple %s6, %s7
  %s9 = sld [smem:[#allocation0]]
  $region46: #{_dqn_forward_device.1} parent=0
    _
  %s11 = ssub.s32 1, %s9
  %s12 = scalar_select 0, %s11, %s9
  %13 = sst [smem:[#allocation2]] %s1
  $region1: #{_dqn_forward_device.1} parent=0
    #allocation3 [shape = 'u8[512]{0}', space=smem, size = 0x200, scoped, tag = 'input window, operand 0, single buffered']
    #allocation4 [shape = 's32[1]{0}', space=sflag, size = 0x4, scoped, tag = 'scoped memory for _dqn_forward_device.1']
    #allocation5 [shape = 's32[1]{0}', space=sflag, size = 0x4, scoped, tag = 'scoped memory for _dqn_forward_device.1']
    #allocation6 [shape = 'u8[512]{0}', space=smem, size = 0x200, scoped, tag = 'output window, operand 0, single buffered']
    #allocation7 [shape = 'u8[512]{0}', space=smem, size = 0x200, scoped, tag = 'output window, operand 1, single buffered']
    #allocation8 [shape = 's32[1]{0}', space=sflag, size = 0x4, scoped, tag = 'scoped memory for _dqn_forward_device.1']
    %14 = vsyncpa [#allocation5], 0
    %15 = vsyncpa [#allocation4], 0
    %16 = vsyncpa [#allocation8], 0
    // Predicated region
    $region2: #{_dqn_forward_device.1} parent=1 // pred_check
      _
    $region3: #{_dqn_forward_device.1} parent=1 // pred_check_branch
      %18 = sbr.rel (0) target = $region5
    $region4: #{_dqn_forward_device.1} parent=1 // pred_region
      %20 = vsyncadd [#allocation5], 0
      %s22 = sshll.u32 %s0, 4
      %s23 = int_to_ptr.vmem [resolvable:$true] %s22
      %25 = dma.vmem_to_smem %s23, 16, [#allocation3], [#allocation5]
    $region5: #{_dqn_forward_device.1} parent=1 // pred_fallthru
      _
    // Predicated region
    $region6: #{_dqn_forward_device.1} parent=1 // pred_check
      _
    $region7: #{_dqn_forward_device.1} parent=1 // pred_check_branch
      %27 = sbr.rel (0) target = $region9
    $region8: #{_dqn_forward_device.1} parent=1 // pred_region
      _
    $region9: #{_dqn_forward_device.1} parent=1 // pred_fallthru
      _
    // Predicated region
    $region10: #{_dqn_forward_device.1} parent=1 // pred_check
      _
    $region11: #{_dqn_forward_device.1} parent=1 // pred_check_branch
      %29 = sbr.rel (0) target = $region13
    $region12: #{_dqn_forward_device.1} parent=1 // pred_region
      _
    $region13: #{_dqn_forward_device.1} parent=1 // pred_fallthru
      _
    // Predicated region
    $region14: #{_dqn_forward_device.1} parent=1 // pred_check
      _
    $region15: #{_dqn_forward_device.1} parent=1 // pred_check_branch
      %31 = sbr.rel (0) target = $region17
    $region16: #{_dqn_forward_device.1} parent=1 // pred_region
      _
    $region17: #{_dqn_forward_device.1} parent=1 // pred_fallthru
      _
    // Predicated region
    $region18: #{_dqn_forward_device.1} parent=1 // pred_check
      _
    $region19: #{_dqn_forward_device.1} parent=1 // pred_check_branch
      %33 = sbr.rel (0) target = $region21
    $region20: #{_dqn_forward_device.1} parent=1 // pred_region
      _
    $region21: #{_dqn_forward_device.1} parent=1 // pred_fallthru
      _
    // Predicated region
    $region22: #{_dqn_forward_device.1} parent=1 // pred_check
      _
    $region23: #{_dqn_forward_device.1} parent=1 // pred_check_branch
      %35 = sbr.rel (0) target = $region25
    $region24: #{_dqn_forward_device.1} parent=1 // pred_region
      _
    $region25: #{_dqn_forward_device.1} parent=1 // pred_fallthru
      _
    // Predicated region
    $region26: #{_dqn_forward_device.1} parent=1 // pred_check
      _
    $region27: #{_dqn_forward_device.1} parent=1 // pred_check_branch
      %37 = sbr.rel (0) target = $region29
    $region28: #{_dqn_forward_device.1} parent=1 // pred_region
      %39 = dma.done [#allocation5], 16
    $region29: #{_dqn_forward_device.1} parent=1 // pred_fallthru
      _
    %40 = sfence
    %v41 = vld [vmem:[%s2] sm:$0x1]
    %v42 = vld [vmem:[%s3] sm:$0xff]
    %v43 = vld [vmem:[%s3 + $0x8] sm:$0xff]
    %v44 = vld [vmem:[%s3 + $0x10] sm:$0xff]
    %v45 = vld [vmem:[%s3 + $0x18] sm:$0xff]
    %v46 = vld [vmem:[%s3 + $0x20] sm:$0xff]
    %v47 = vld [vmem:[%s3 + $0x28] sm:$0xff]
    %v48 = vld [vmem:[%s3 + $0x30] sm:$0xff]
    %v49 = vld [vmem:[%s3 + $0x38] sm:$0xff]
    %v51 = vperm.slane %v41, 0
    %v53 = vmul.f32 %v42, %v51
    %v54 = vmul.f32 %v43, %v51
    %v55 = vmul.f32 %v44, %v51
    %v56 = vmul.f32 %v45, %v51
    %v57 = vmul.f32 %v46, %v51
    %v58 = vmul.f32 %v47, %v51
    %v59 = vmul.f32 %v48, %v51
    %v60 = vmul.f32 %v49, %v51
    %61 = vadd.xlane.f32.xlu0 %v53
    %v62 = vpop.xlane.xlu0 %61
    %63 = vadd.xlane.f32.xlu0 %v54
    %v64 = vpop.xlane.xlu0 %63
    %65 = vadd.xlane.f32.xlu0 %v55
    %v66 = vpop.xlane.xlu0 %65
    %67 = vadd.xlane.f32.xlu0 %v56
    %v68 = vpop.xlane.xlu0 %67
    %69 = vadd.xlane.f32.xlu0 %v57
    %v70 = vpop.xlane.xlu0 %69
    %71 = vadd.xlane.f32.xlu0 %v58
    %v72 = vpop.xlane.xlu0 %71
    %73 = vadd.xlane.f32.xlu0 %v59
    %v74 = vpop.xlane.xlu0 %73
    %75 = vadd.xlane.f32.xlu0 %v60
    %v76 = vpop.xlane.xlu0 %75
    %v77 = vmax.f32 %v62, 0.0
    %v78 = vmax.f32 %v64, 0.0
    %v79 = vmax.f32 %v66, 0.0
    %v80 = vmax.f32 %v68, 0.0
    %v81 = vmax.f32 %v70, 0.0
    %v82 = vmax.f32 %v72, 0.0
    %v83 = vmax.f32 %v74, 0.0
    %v84 = vmax.f32 %v76, 0.0
    %v85 = vld [vmem:[%s4] sm:$0xff]
    %v86 = vld [vmem:[%s4 + $0x8] sm:$0xff]
    %v87 = vld [vmem:[%s4 + $0x10] sm:$0xff]
    %v88 = vld [vmem:[%s4 + $0x18] sm:$0xff]
    %v89 = vld [vmem:[%s4 + $0x20] sm:$0xff]
    %v90 = vld [vmem:[%s4 + $0x28] sm:$0xff]
    %v91 = vld [vmem:[%s4 + $0x30] sm:$0xff]
    %v92 = vld [vmem:[%s4 + $0x38] sm:$0xff]
    %v93 = vmul.f32 %v77, %v85
    %v94 = vmul.f32 %v78, %v86
    %v95 = vmul.f32 %v79, %v87
    %v96 = vmul.f32 %v80, %v88
    %v97 = vmul.f32 %v81, %v89
    %v98 = vmul.f32 %v82, %v90
    %v99 = vmul.f32 %v83, %v91
    %v100 = vmul.f32 %v84, %v92
    %v101 = vadd.f32 %v93, %v94
    %v102 = vadd.f32 %v101, %v95
    %v103 = vadd.f32 %v102, %v96
    %v104 = vadd.f32 %v103, %v97
    %v105 = vadd.f32 %v104, %v98
    %v106 = vadd.f32 %v105, %v99
    %v107 = vadd.f32 %v106, %v100
    %v108 = vrot.slane %v107, 4
    %v109 = vadd.f32 %v107, %v108
    %v110 = vrot.slane %v109, 2
    %v111 = vadd.f32 %v109, %v110
    %v112 = vrot.slane %v111, 1
    %v113 = vadd.f32 %v111, %v112
    %v114 = vld [vmem:[%s5] sm:$0x1]
    %v115 = vadd.f32 %v113, %v114
    %vm116 = vcmask 1040384
    %v117 = vsel %vm116, %v115, -inf
    %118 = vmax.xlane.f32.xlu0 %v117
    %v119 = vpop.xlane.xlu0 %118
    %v120 = vrot.slane %v119, 4
    %v121 = vmax.f32 %v119, %v120
    %v122 = vrot.slane %v121, 2
    %v123 = vmax.f32 %v121, %v122
    %v124 = vrot.slane %v123, 1
    %v125 = vmax.f32 %v123, %v124
    %s126 = vtos %v125
    %v127 = vlaneseq
    %v128 = vand.u32 %v127, 127
    %v129 = vstv %s126
    %vm130 = vcmp.eq.f32.partialorder %v115, %v129
    %v131 = vsel %vm130, %v128, 1073741824
    %v132 = vsel %vm116, %v131, 2147483647
    %v133 = vand.u32 %v132, 65535
    %v134 = vshra.s32 %v132, 16
    %v135 = vcvt.s32.f32 %v133
    %v136 = vcvt.s32.f32 %v134
    %137 = vmin.xlane.f32.xlu0 %v136
    %v138 = vpop.xlane.xlu0 %137
    %vm139 = vcmp.eq.f32.partialorder %v136, %v138
    %v140 = vsel %vm139, %v135, inf
    %141 = vmin.xlane.f32.xlu0 %v140
    %v142 = vpop.xlane.xlu0 %141
    %v143 = vcvt.f32.s32 %v142
    %v144 = vcvt.f32.s32 %v138
    %v145 = vshll.u32 %v144, 16
    %v146 = vadd.s32 %v145, %v143
    %v147 = vrot.slane %v146, 4
    %vm148 = vcmp.lt.s32.totalorder %v146, %v147
    %v149 = vsel %vm148, %v146, %v147
    %v150 = vrot.slane %v149, 2
    %vm151 = vcmp.lt.s32.totalorder %v149, %v150
    %v152 = vsel %vm151, %v149, %v150
    %v153 = vrot.slane %v152, 1
    %vm154 = vcmp.lt.s32.totalorder %v152, %v153
    %v155 = vsel %vm154, %v152, %v153
    %s156 = vtos %v155
    %s157 = sld [smem:[#allocation3 + $0x1]]
    %s158 = sld [smem:[#allocation3]]
    %p159 = scmp.lt.f32.partialorder %s157, %s158
    %s160 = sld [smem:[#allocation2]]
    %s161 = scalar_select %p159, %s160, %s156
    %s162 = scalar_lea.smem [#allocation6], 0
    %163 = sst [smem:[%s162]] %s161
    %v164 = vstv %s161
    %vm165 = vcmp.eq.s32.totalorder %v128, %v164
    %v166 = vsel %vm165, %v115, 0.0
    %v167 = vsel %vm116, %v166, 0.0
    %168 = vadd.xlane.f32.xlu0 %v167
    %v169 = vpop.xlane.xlu0 %168
    %v170 = vrot.slane %v169, 4
    %v171 = vadd.f32 %v169, %v170
    %v172 = vrot.slane %v171, 2
    %v173 = vadd.f32 %v171, %v172
    %v174 = vrot.slane %v173, 1
    %v175 = vadd.f32 %v173, %v174
    %s176 = vtos %v175
    %s177 = scalar_lea.smem [#allocation7], 0
    %178 = sst [smem:[%s177]] %s176
    // Predicated region
    $region30: #{_dqn_forward_device.1} parent=1 // pred_check
      _
    $region31: #{_dqn_forward_device.1} parent=1 // pred_check_branch
      %180 = sbr.rel (0) target = $region33
    $region32: #{_dqn_forward_device.1} parent=1 // pred_region
      %182 = vsyncadd [#allocation4], 0
      %s184 = sshll.u32 %s6, 4
      %s185 = int_to_ptr.hbm [resolvable:$true] %s184
      %187 = dma.smem_to_hbm [#allocation6], 16, %s185, [#allocation4]
    $region33: #{_dqn_forward_device.1} parent=1 // pred_fallthru
      _
    // Predicated region
    $region34: #{_dqn_forward_device.1} parent=1 // pred_check
      _
    $region35: #{_dqn_forward_device.1} parent=1 // pred_check_branch
      %189 = sbr.rel (0) target = $region37
    $region36: #{_dqn_forward_device.1} parent=1 // pred_region
      %191 = vsyncadd [#allocation8], 0
      %s193 = sshll.u32 %s7, 4
      %s194 = int_to_ptr.hbm [resolvable:$true] %s193
      %196 = dma.smem_to_hbm [#allocation7], 16, %s194, [#allocation8]
    $region37: #{_dqn_forward_device.1} parent=1 // pred_fallthru
      _
    // Predicated region
    $region38: #{_dqn_forward_device.1} parent=1 // pred_check
      _
    $region39: #{_dqn_forward_device.1} parent=1 // pred_check_branch
      %198 = sbr.rel (0) target = $region41
    $region40: #{_dqn_forward_device.1} parent=1 // pred_region
      %200 = dma.done [#allocation4], 16
    $region41: #{_dqn_forward_device.1} parent=1 // pred_fallthru
      _
    // Predicated region
    $region42: #{_dqn_forward_device.1} parent=1 // pred_check
      _
    $region43: #{_dqn_forward_device.1} parent=1 // pred_check_branch
      %202 = sbr.rel (0) target = $region45
    $region44: #{_dqn_forward_device.1} parent=1 // pred_region
      %204 = dma.done [#allocation8], 16
    $region45: #{_dqn_forward_device.1} parent=1 // pred_fallthru
      _
    %205 = sfence
    %206 = vsyncpa [#allocation4], 1
    %207 = vsyncpa [#allocation8], 1
    %208 = vsyncpa [#allocation5], 1

</llo_original>
